<compile_context>
chip_gen: v7x
topology: tpu7x:2x2x1
jax: 0.10.0
libtpu: 0.0.40
codegen_flags: <defaults>
</compile_context>

<pallas_src>
import functools

import jax
import jax.numpy as jnp
from jax.experimental import pallas as pl
from jax.experimental.pallas import tpu as pltpu


# ----------------------------------------------------------------------------
# Fused Pallas kernel: GCN0 + ReLU + GCN1 + ReLU, transposed (lane-dense) layout
# ----------------------------------------------------------------------------

def _full_spec(shape):
    nd = len(shape)
    return pl.BlockSpec(shape, lambda i, nd=nd: (0,) * nd)


def _encoder_kernel(at_ref, xt_ref, w0t_ref, b0_ref, w1t_ref, b1_ref, o_ref,
                    *, mxu_dtype):
    # Transposed dataflow (activations are [feat, N] -> N on the 128 lanes):
    #   h^T = relu(W0^T @ (X^T @ A^T) + b0)           (F_in < hid: A-mult first)
    #   o^T = relu((W1^T @ h^T) @ A^T + b1)           (out < hid: project first)
    at = at_ref[...]                                           # [N, N]  (bf16)

    # ---- layer 0 ----
    xa = jnp.dot(xt_ref[...], at,                              # [F_in, N] f32
                 preferred_element_type=jnp.float32)
    h = jnp.dot(w0t_ref[...], xa.astype(mxu_dtype),            # [hid, N]  f32
                preferred_element_type=jnp.float32)
    h = jnp.maximum(h + b0_ref[...], 0.0)                      # f32 VPU

    # ---- layer 1 (re-associated) ----
    z = jnp.dot(w1t_ref[...], h.astype(mxu_dtype),             # [out, hid]x[hid, N]
                preferred_element_type=jnp.float32)
    out = jnp.dot(z.astype(mxu_dtype), at,                     # [out, N]x[N, N]
                  preferred_element_type=jnp.float32)
    out = jnp.maximum(out + b1_ref[...], 0.0)

    o_ref[...] = out.astype(o_ref.dtype)                       # lane-dense store


def encoder_forward(params, x, edge_index, *, use_bf16=True):
    """Pallas forward of Encoder(in_dim, hid_dim, out_dim, relu, GCNConv, k=2)."""
    n, _ = x.shape
    hid = params["w0"].shape[1]
    out_dim = params["w1"].shape[1]
    mxu = jnp.bfloat16 if use_bf16 else jnp.float32

    # Host-side prep: everything the MXU touches is already bf16, and A^T is
    # built directly (no XLA transpose of the largest array).
    a_norm_t = build_gcn_adj_t(edge_index, n).astype(mxu)      # A_norm^T  [N, N]
    xt = x.T.astype(mxu)                                       # X^T       [F_in, N]
    w0t = params["w0"].T.astype(mxu)                           # [hid, F_in]
    w1t = params["w1"].T.astype(mxu)                           # [out, hid]
    # Lane-dense bias tiles (plain VPU adds inside the kernel).
    b0 = jnp.broadcast_to(params["b0"][:, None], (hid, n)).astype(jnp.float32)
    b1 = jnp.broadcast_to(params["b1"][:, None], (out_dim, n)).astype(jnp.float32)

    out_t = pl.pallas_call(
        functools.partial(_encoder_kernel, mxu_dtype=mxu),
        grid=(1,),
        in_specs=[_full_spec(a_norm_t.shape), _full_spec(xt.shape),
                  _full_spec(w0t.shape), _full_spec(b0.shape),
                  _full_spec(w1t.shape), _full_spec(b1.shape)],
        out_specs=_full_spec((out_dim, n)),
        out_shape=jax.ShapeDtypeStruct((out_dim, n), jnp.float32),
        compiler_params=pltpu.CompilerParams(
            dimension_semantics=("arbitrary",)),
    )(a_norm_t, xt, w0t, b0, w1t, b1)

    return out_t.T                                             # [N, out_dim]


# ----------------------------------------------------------------------------
# Glue: adjacency normalization (plain JAX), params, pure-JAX reference
# ----------------------------------------------------------------------------

def build_gcn_adj_t(edge_index, n):
    """Dense PyG-style GCN normalization, built directly TRANSPOSED.

    Returns (D^{-1/2} (A + I) D^{-1/2})^T.  Duplicate edges accumulate
    (scatter-add, like PyG's add aggregation); existing self-loops are
    replaced by a single unit self-loop (add_remaining_self_loops semantics
    modulo duplicated self-loop edges -- see TODO below).
    """
    src, dst = edge_index
    w = jnp.where(src != dst, 1.0, 0.0).astype(jnp.float32)
    # A[dst, src] += w  ==>  A^T[src, dst] += w
    at = jnp.zeros((n, n), jnp.float32).at[src, dst].add(w)
    at = at.at[jnp.arange(n), jnp.arange(n)].set(1.0)
    deg = at.sum(axis=0)                       # row sums of A = col sums of A^T
    dinv = jax.lax.rsqrt(jnp.maximum(deg, 1e-12))
    # Symmetric scaling commutes with transpose.
    return at * dinv[:, None] * dinv[None, :]
    # TODO(synk): PyG keeps (and accumulates) duplicated pre-existing
    # self-loops; this sets a single unit self-loop per node.


def init_params(key, in_dim, hid_dim, out_dim):
    k0, k1, k2, k3 = jax.random.split(key, 4)

    def glorot(k, shape):
        s = jnp.sqrt(6.0 / (shape[0] + shape[1]))
        return jax.random.uniform(k, shape, jnp.float32, -s, s)

    return {
        "w0": glorot(k0, (in_dim, hid_dim)),
        "b0": 0.01 * jax.random.normal(k1, (hid_dim,), jnp.float32),
        "w1": glorot(k2, (hid_dim, out_dim)),
        "b1": 0.01 * jax.random.normal(k3, (out_dim,), jnp.float32),
    }


def reference_forward(params, x, edge_index):
    """Pure-JAX f32 reference of the same Encoder forward."""
    n = x.shape[0]
    a = build_gcn_adj_t(edge_index, n).T
    h = jnp.maximum(a @ (x @ params["w0"]) + params["b0"], 0.0)
    h = jnp.maximum(a @ (h @ params["w1"]) + params["b1"], 0.0)
    return h


if __name__ == "__main__":
    N, F_IN, HID, OUT = 128, 16, 32, 8

    key = jax.random.PRNGKey(0)
    k_x, k_src, k_dst, k_par = jax.random.split(key, 4)

    x = jax.random.normal(k_x, (N, F_IN), jnp.float32)
    n_edges = 512
    src = jax.random.randint(k_src, (n_edges,), 0, N)
    dst = jax.random.randint(k_dst, (n_edges,), 0, N)
    edge_index = jnp.stack([src, dst])                 # [2, E]

    params = init_params(k_par, F_IN, HID, OUT)

    out = encoder_forward(params, x, edge_index)
    out = jax.block_until_ready(out)

    ref = reference_forward(params, x, edge_index)

    assert out.shape == (N, OUT)
    assert bool(jnp.all(jnp.isfinite(out)))
    err = float(jnp.max(jnp.abs(out - ref)))
    scale = float(jnp.max(jnp.abs(ref)))
    # bf16 MXU inputs with f32 accumulation -> small, bounded error vs f32 ref.
    assert err <= 1e-2 + 5e-2 * scale, (err, scale)

    print("KERNEL_OK")
</pallas_src>

<mosaic_0001>
module attributes {stable_mosaic.version = 11 : i64} {
  func.func @_encoder_kernel(%arg0: i32, %arg1: memref<128x128xbf16, #tpu.memory_space<vmem>>, %arg2: memref<16x128xbf16, #tpu.memory_space<vmem>>, %arg3: memref<32x16xbf16, #tpu.memory_space<vmem>>, %arg4: memref<32x128xf32, #tpu.memory_space<vmem>>, %arg5: memref<8x32xbf16, #tpu.memory_space<vmem>>, %arg6: memref<8x128xf32, #tpu.memory_space<vmem>>, %arg7: memref<8x128xf32, #tpu.memory_space<vmem>>) attributes {dimension_semantics = [#tpu.dimension_semantics<arbitrary>], iteration_bounds = array<i64: 1>, scalar_prefetch = 0 : i64, scratch_operands = 0 : i64, tpu.core_type = #tpu.core_type<tc>, window_params = [{pipeline_mode = #tpu.pipeline_mode<synchronous>, transform_indices = @transform_0, window_bounds = array<i64: 128, 128>}, {pipeline_mode = #tpu.pipeline_mode<synchronous>, transform_indices = @transform_1, window_bounds = array<i64: 16, 128>}, {pipeline_mode = #tpu.pipeline_mode<synchronous>, transform_indices = @transform_2, window_bounds = array<i64: 32, 16>}, {pipeline_mode = #tpu.pipeline_mode<synchronous>, transform_indices = @transform_3, window_bounds = array<i64: 32, 128>}, {pipeline_mode = #tpu.pipeline_mode<synchronous>, transform_indices = @transform_4, window_bounds = array<i64: 8, 32>}, {pipeline_mode = #tpu.pipeline_mode<synchronous>, transform_indices = @transform_5, window_bounds = array<i64: 8, 128>}, {pipeline_mode = #tpu.pipeline_mode<synchronous>, transform_indices = @transform_6, window_bounds = array<i64: 8, 128>}]} {
    %c0 = arith.constant 0 : index
    %c0_0 = arith.constant 0 : index
    %0 = vector.load %arg1[%c0, %c0_0] : memref<128x128xbf16, #tpu.memory_space<vmem>>, vector<128x128xbf16>
    %c0_1 = arith.constant 0 : index
    %c0_2 = arith.constant 0 : index
    %1 = vector.load %arg2[%c0_1, %c0_2] : memref<16x128xbf16, #tpu.memory_space<vmem>>, vector<16x128xbf16>
    %cst = arith.constant dense<0.000000e+00> : vector<16x128xf32>
    %2 = tpu.matmul %1, %0, %cst {dimension_numbers = #tpu.dot_dimension_numbers<[1], [0], [0], [1], [0, 0, 1, 1], [], []>} : vector<16x128xbf16>, vector<128x128xbf16>, vector<16x128xf32> -> vector<16x128xf32>
    %c0_3 = arith.constant 0 : index
    %c0_4 = arith.constant 0 : index
    %3 = vector.load %arg3[%c0_3, %c0_4] : memref<32x16xbf16, #tpu.memory_space<vmem>>, vector<32x16xbf16>
    %4 = arith.truncf %2 : vector<16x128xf32> to vector<16x128xbf16>
    %cst_5 = arith.constant dense<0.000000e+00> : vector<32x128xf32>
    %5 = tpu.matmul %3, %4, %cst_5 {dimension_numbers = #tpu.dot_dimension_numbers<[1], [0], [0], [1], [0, 0, 1, 1], [], []>} : vector<32x16xbf16>, vector<16x128xbf16>, vector<32x128xf32> -> vector<32x128xf32>
    %c0_6 = arith.constant 0 : index
    %c0_7 = arith.constant 0 : index
    %6 = vector.load %arg4[%c0_6, %c0_7] : memref<32x128xf32, #tpu.memory_space<vmem>>, vector<32x128xf32>
    %7 = arith.addf %5, %6 : vector<32x128xf32>
    %cst_8 = arith.constant 0.000000e+00 : f32
    %8 = vector.broadcast %cst_8 : f32 to vector<32x128xf32>
    %9 = arith.maximumf %7, %8 : vector<32x128xf32>
    %c0_9 = arith.constant 0 : index
    %c0_10 = arith.constant 0 : index
    %10 = vector.load %arg5[%c0_9, %c0_10] : memref<8x32xbf16, #tpu.memory_space<vmem>>, vector<8x32xbf16>
    %11 = arith.truncf %9 : vector<32x128xf32> to vector<32x128xbf16>
    %cst_11 = arith.constant dense<0.000000e+00> : vector<8x128xf32>
    %12 = tpu.matmul %10, %11, %cst_11 {dimension_numbers = #tpu.dot_dimension_numbers<[1], [0], [0], [1], [0, 0, 1, 1], [], []>} : vector<8x32xbf16>, vector<32x128xbf16>, vector<8x128xf32> -> vector<8x128xf32>
    %13 = arith.truncf %12 : vector<8x128xf32> to vector<8x128xbf16>
    %cst_12 = arith.constant dense<0.000000e+00> : vector<8x128xf32>
    %14 = tpu.matmul %13, %0, %cst_12 {dimension_numbers = #tpu.dot_dimension_numbers<[1], [0], [0], [1], [0, 0, 1, 1], [], []>} : vector<8x128xbf16>, vector<128x128xbf16>, vector<8x128xf32> -> vector<8x128xf32>
    %c0_13 = arith.constant 0 : index
    %c0_14 = arith.constant 0 : index
    %15 = vector.load %arg6[%c0_13, %c0_14] : memref<8x128xf32, #tpu.memory_space<vmem>>, vector<8x128xf32>
    %16 = arith.addf %14, %15 : vector<8x128xf32>
    %cst_15 = arith.constant 0.000000e+00 : f32
    %17 = vector.broadcast %cst_15 : f32 to vector<8x128xf32>
    %18 = arith.maximumf %16, %17 : vector<8x128xf32>
    %c0_16 = arith.constant 0 : index
    %c0_17 = arith.constant 0 : index
    %19 = vector.load %arg7[%c0_16, %c0_17] : memref<8x128xf32, #tpu.memory_space<vmem>>, vector<8x128xf32>
    tpu.vector_store %arg7[%c0_16, %c0_17], %18 {strides = array<i32>} : memref<8x128xf32, #tpu.memory_space<vmem>>, vector<8x128xf32>,
    return
  }
  func.func @transform_0(%arg0: i32) -> (i32, i32) {
    %c0_i32 = arith.constant 0 : i32
    %c0_i32_0 = arith.constant 0 : i32
    %c0_i32_1 = arith.constant 0 : i32
    return %c0_i32, %c0_i32_0 : i32, i32
  }
  func.func @transform_1(%arg0: i32) -> (i32, i32) {
    %c0_i32 = arith.constant 0 : i32
    %c0_i32_0 = arith.constant 0 : i32
    %c0_i32_1 = arith.constant 0 : i32
    return %c0_i32, %c0_i32_0 : i32, i32
  }
  func.func @transform_2(%arg0: i32) -> (i32, i32) {
    %c0_i32 = arith.constant 0 : i32
    %c0_i32_0 = arith.constant 0 : i32
    %c0_i32_1 = arith.constant 0 : i32
    return %c0_i32, %c0_i32_0 : i32, i32
  }
  func.func @transform_3(%arg0: i32) -> (i32, i32) {
    %c0_i32 = arith.constant 0 : i32
    %c0_i32_0 = arith.constant 0 : i32
    %c0_i32_1 = arith.constant 0 : i32
    return %c0_i32, %c0_i32_0 : i32, i32
  }
  func.func @transform_4(%arg0: i32) -> (i32, i32) {
    %c0_i32 = arith.constant 0 : i32
    %c0_i32_0 = arith.constant 0 : i32
    %c0_i32_1 = arith.constant 0 : i32
    return %c0_i32, %c0_i32_0 : i32, i32
  }
  func.func @transform_5(%arg0: i32) -> (i32, i32) {
    %c0_i32 = arith.constant 0 : i32
    %c0_i32_0 = arith.constant 0 : i32
    %c0_i32_1 = arith.constant 0 : i32
    return %c0_i32, %c0_i32_0 : i32, i32
  }
  func.func @transform_6(%arg0: i32) -> (i32, i32) {
    %c0_i32 = arith.constant 0 : i32
    %c0_i32_0 = arith.constant 0 : i32
    %c0_i32_1 = arith.constant 0 : i32
    return %c0_i32, %c0_i32_0 : i32, i32
  }
}

</mosaic_0001>

<llo_original>
// kernel: tpu_custom_call.1
$region0: #{tpu_custom_call.1}
  #allocation0 [shape = 'u32[]', space=smem, size = 0x4, offset = 0x4, fixed_abs, tag = 'smem constant byte address 0x4 - core index']
  #allocation1 [shape = 'u32[144,128]{1,0:T(1,128)}', space=vmem, size = 0x12000, scoped, tag = 'internal scratch']
  %s0 = inlined_call_operand.hbm [shape: bf16[128,128], index: 0, kind: input, shape index: {}]
  %s1 = inlined_call_operand.hbm [shape: bf16[16,128], index: 1, kind: input, shape index: {}]
  %s2 = inlined_call_operand.vmem [shape: bf16[32,16], index: 2, kind: input, shape index: {}]
  %s3 = inlined_call_operand.vmem [shape: f32[32,128], index: 3, kind: input, shape index: {}]
  %s4 = inlined_call_operand.hbm [shape: bf16[8,32], index: 4, kind: input, shape index: {}]
  %s5 = inlined_call_operand.vmem [shape: f32[8,128], index: 5, kind: input, shape index: {}]
  %s6 = inlined_call_operand.hbm [shape: f32[8,128], index: 6, kind: output, shape index: {}]
  %s7 = sld [smem:[#allocation0]]
  $region46: #{tpu_custom_call.1} parent=0
    _
  %s9 = ssub.s32 1, %s7
  %s10 = scalar_select 0, %s9, %s7
  $region1: #{tpu_custom_call.1} parent=0
    #allocation2 [shape = 'u8[32768]{0}', space=vmem, size = 0x8000, scoped, tag = 'input window, operand 0, single buffered']
    #allocation3 [shape = 's32[1]{0}', space=sflag, size = 0x4, scoped, tag = 'scoped memory for tpu_custom_call.1']
    #allocation4 [shape = 's32[1]{0}', space=sflag, size = 0x4, scoped, tag = 'scoped memory for tpu_custom_call.1']
    #allocation5 [shape = 'u8[4096]{0}', space=vmem, size = 0x1000, scoped, tag = 'input window, operand 1, single buffered']
    #allocation6 [shape = 's32[1]{0}', space=sflag, size = 0x4, scoped, tag = 'scoped memory for tpu_custom_call.1']
    #allocation7 [shape = 'u8[2048]{0}', space=vmem, size = 0x800, scoped, tag = 'input window, operand 4, single buffered']
    #allocation8 [shape = 'u8[4096]{0}', space=vmem, size = 0x1000, scoped, tag = 'output window, operand 0, single buffered']
    %11 = vsyncpa [#allocation3], 0
    %12 = vsyncpa [#allocation6], 0
    %13 = vsyncpa [#allocation4], 0
    // Predicated region
    $region2: #{tpu_custom_call.1} parent=1 // pred_check
      _
    $region3: #{tpu_custom_call.1} parent=1 // pred_check_branch
      %15 = sbr.rel (0) target = $region5
    $region4: #{tpu_custom_call.1} parent=1 // pred_region
      %s17 = ssub.s32 1024, 1024
      %18 = vsyncadd [#allocation3], %s17
      %s19 = sshll.u32 [#allocation2], 4
      %s20 = int_to_ptr.vmem [resolvable:$true] %s19
      %25 = dma.hbm_to_vmem [thread:$0]  %s0, 1024, %s20, [#allocation3], 64, 64, 4
    $region5: #{tpu_custom_call.1} parent=1 // pred_fallthru
      _
    // Predicated region
    $region6: #{tpu_custom_call.1} parent=1 // pred_check
      _
    $region7: #{tpu_custom_call.1} parent=1 // pred_check_branch
      %27 = sbr.rel (0) target = $region9
    $region8: #{tpu_custom_call.1} parent=1 // pred_region
      %s29 = ssub.s32 128, 128
      %30 = vsyncadd [#allocation6], %s29
      %s31 = sshll.u32 [#allocation5], 4
      %s32 = int_to_ptr.vmem [resolvable:$true] %s31
      %37 = dma.hbm_to_vmem [thread:$0]  %s1, 128, %s32, [#allocation6], 64, 64, 4
    $region9: #{tpu_custom_call.1} parent=1 // pred_fallthru
      _
    // Predicated region
    $region10: #{tpu_custom_call.1} parent=1 // pred_check
      _
    $region11: #{tpu_custom_call.1} parent=1 // pred_check_branch
      %39 = sbr.rel (0) target = $region13
    $region12: #{tpu_custom_call.1} parent=1 // pred_region
      _
    $region13: #{tpu_custom_call.1} parent=1 // pred_fallthru
      _
    // Predicated region
    $region14: #{tpu_custom_call.1} parent=1 // pred_check
      _
    $region15: #{tpu_custom_call.1} parent=1 // pred_check_branch
      %41 = sbr.rel (0) target = $region17
    $region16: #{tpu_custom_call.1} parent=1 // pred_region
      _
    $region17: #{tpu_custom_call.1} parent=1 // pred_fallthru
      _
    // Predicated region
    $region18: #{tpu_custom_call.1} parent=1 // pred_check
      _
    $region19: #{tpu_custom_call.1} parent=1 // pred_check_branch
      %43 = sbr.rel (0) target = $region21
    $region20: #{tpu_custom_call.1} parent=1 // pred_region
      %s45 = ssub.s32 64, 64
      %46 = vsyncadd [#allocation6], %s45
      %s48 = sshll.u32 [#allocation7], 4
      %s49 = int_to_ptr.vmem [resolvable:$true] %s48
      %51 = dma.hbm_to_vmem [thread:$0]  %s4, 64, %s49, [#allocation6]
    $region21: #{tpu_custom_call.1} parent=1 // pred_fallthru
      _
    // Predicated region
    $region22: #{tpu_custom_call.1} parent=1 // pred_check
      _
    $region23: #{tpu_custom_call.1} parent=1 // pred_check_branch
      %53 = sbr.rel (0) target = $region25
    $region24: #{tpu_custom_call.1} parent=1 // pred_region
      _
    $region25: #{tpu_custom_call.1} parent=1 // pred_fallthru
      _
    // Predicated region
    $region26: #{tpu_custom_call.1} parent=1 // pred_check
      _
    $region27: #{tpu_custom_call.1} parent=1 // pred_check_branch
      %55 = sbr.rel (0) target = $region29
    $region28: #{tpu_custom_call.1} parent=1 // pred_region
      %56 = dma.done [#allocation3], 1024
    $region29: #{tpu_custom_call.1} parent=1 // pred_fallthru
      _
    // Predicated region
    $region30: #{tpu_custom_call.1} parent=1 // pred_check
      _
    $region31: #{tpu_custom_call.1} parent=1 // pred_check_branch
      %58 = sbr.rel (0) target = $region33
    $region32: #{tpu_custom_call.1} parent=1 // pred_region
      %59 = dma.done [#allocation6], 128
    $region33: #{tpu_custom_call.1} parent=1 // pred_fallthru
      _
    // Predicated region
    $region34: #{tpu_custom_call.1} parent=1 // pred_check
      _
    $region35: #{tpu_custom_call.1} parent=1 // pred_check_branch
      %61 = sbr.rel (0) target = $region37
    $region36: #{tpu_custom_call.1} parent=1 // pred_region
      %62 = dma.done [#allocation6], 64
    $region37: #{tpu_custom_call.1} parent=1 // pred_fallthru
      _
    %v64 = vld [vmem:[#allocation2] sm:$0xf]
    %v65 = vld [vmem:[#allocation2 + $0x4] sm:$0xf]
    %v66 = vld [vmem:[#allocation2 + $0x8] sm:$0xf]
    %v67 = vld [vmem:[#allocation2 + $0xc] sm:$0xf]
    %v68 = vld [vmem:[#allocation2 + $0x10] sm:$0xf]
    %v69 = vld [vmem:[#allocation2 + $0x14] sm:$0xf]
    %v70 = vld [vmem:[#allocation2 + $0x18] sm:$0xf]
    %v71 = vld [vmem:[#allocation2 + $0x1c] sm:$0xf]
    %v72 = vld [vmem:[#allocation2 + $0x20] sm:$0xf]
    %v73 = vld [vmem:[#allocation2 + $0x24] sm:$0xf]
    %v74 = vld [vmem:[#allocation2 + $0x28] sm:$0xf]
    %v75 = vld [vmem:[#allocation2 + $0x2c] sm:$0xf]
    %v76 = vld [vmem:[#allocation2 + $0x30] sm:$0xf]
    %v77 = vld [vmem:[#allocation2 + $0x34] sm:$0xf]
    %v78 = vld [vmem:[#allocation2 + $0x38] sm:$0xf]
    %v79 = vld [vmem:[#allocation2 + $0x3c] sm:$0xf]
    %v80 = vld [vmem:[#allocation5] sm:$0xf]
    %v81 = vld [vmem:[#allocation5 + $0x4] sm:$0xf]
    %v84 = vunpack.c.l.b16 %v80
    %v85 = vunpack.c.l.b16 %v81
    %v86 = vpack.c.b16 %v85, %v84
    %v104 = vunpack.c.l.b16 %v64
    %v105 = vunpack.c.l.b16 %v65
    %v106 = vunpack.c.l.b16 %v66
    %v107 = vunpack.c.l.b16 %v67
    %v108 = vunpack.c.l.b16 %v68
    %v109 = vunpack.c.l.b16 %v69
    %v110 = vunpack.c.l.b16 %v70
    %v111 = vunpack.c.l.b16 %v71
    %v112 = vunpack.c.l.b16 %v72
    %v113 = vunpack.c.l.b16 %v73
    %v114 = vunpack.c.l.b16 %v74
    %v115 = vunpack.c.l.b16 %v75
    %v116 = vunpack.c.l.b16 %v76
    %v117 = vunpack.c.l.b16 %v77
    %v118 = vunpack.c.l.b16 %v78
    %v119 = vunpack.c.l.b16 %v79
    %v120 = vpack.c.b16 %v105, %v104
    %v121 = vpack.c.b16 %v107, %v106
    %v122 = vpack.c.b16 %v109, %v108
    %v123 = vpack.c.b16 %v111, %v110
    %v124 = vpack.c.b16 %v113, %v112
    %v125 = vpack.c.b16 %v115, %v114
    %v126 = vpack.c.b16 %v117, %v116
    %v127 = vpack.c.b16 %v119, %v118
    %136 = vmatprep.subr.bf16.mxu0 0
    %137 = vmatpush1.bf16.msra.mxu0 %v120
    %138 = vmatprep.subr.bf16.mxu0 0
    %139 = vmatpush1.bf16.msra.mxu0 %v121
    %140 = vmatprep.subr.bf16.mxu0 0
    %141 = vmatpush1.bf16.msra.mxu0 %v122
    %142 = vmatprep.subr.bf16.mxu0 0
    %143 = vmatpush1.bf16.msra.mxu0 %v123
    %144 = vmatprep.subr.bf16.mxu0 0
    %145 = vmatpush1.bf16.msra.mxu0 %v124
    %146 = vmatprep.subr.bf16.mxu0 0
    %147 = vmatpush1.bf16.msra.mxu0 %v125
    %148 = vmatprep.subr.bf16.mxu0 0
    %149 = vmatpush1.bf16.msra.mxu0 %v126
    %150 = vmatprep.subr.bf16.mxu0 0
    %151 = vmatpush1.bf16.msra.mxu0 %v127
    %152 = vmatprep.subr.bf16.mxu0 0
    %153 = vmatpush1.bf16.msra.mxu0 0
    %154 = vmatprep.subr.bf16.mxu0 0
    %155 = vmatpush1.bf16.msra.mxu0 0
    %156 = vmatprep.subr.bf16.mxu0 0
    %157 = vmatpush1.bf16.msra.mxu0 0
    %158 = vmatprep.subr.bf16.mxu0 0
    %159 = vmatpush1.bf16.msra.mxu0 0
    %160 = vmatprep.subr.bf16.mxu0 0
    %161 = vmatpush1.bf16.msra.mxu0 0
    %162 = vmatprep.subr.bf16.mxu0 0
    %163 = vmatpush1.bf16.msra.mxu0 0
    %164 = vmatprep.subr.bf16.mxu0 0
    %165 = vmatpush1.bf16.msra.mxu0 0
    %166 = vmatprep.subr.bf16.mxu0 0
    %167 = vmatpush1.bf16.msra.mxu0 0
    %168 = vmatprep.mubr.bf16.mxu0 0
    %169 = vmatmul.mubr.bf16.gmra.mrb[0].mxu0 %v86
    %v170 = vpop.f32.mrb[0].mxu0
    %v171 = vadd.f32 0.0, %v170
    %v172 = vpop.f32.mrb[0].mxu0
    %v173 = vpop.f32.mrb[0].mxu0
    %v174 = vadd.f32 0.0, %v173
    %v175 = vpop.f32.mrb[0].mxu0
    %176 = vdwg.mxu0
    %v177 = vld [vmem:[%s2] sm:$0xf]
    %v178 = vld [vmem:[%s2 + $0x4] sm:$0xf]
    %v179 = vld [vmem:[%s2 + $0x8] sm:$0xf]
    %v180 = vld [vmem:[%s2 + $0xc] sm:$0xf]
    %v181 = vpack.c.bf16 %v174, %v171
    %v182 = vld [vmem:[%s3] sm:$0xff]
    %v183 = vld [vmem:[%s3 + $0x8] sm:$0xff]
    %v184 = vld [vmem:[%s3 + $0x10] sm:$0xff]
    %v185 = vld [vmem:[%s3 + $0x18] sm:$0xff]
    %v190 = vunpack.c.l.b16 %v177
    %v191 = vunpack.c.l.b16 %v178
    %v192 = vunpack.c.l.b16 %v179
    %v193 = vunpack.c.l.b16 %v180
    %v194 = vpack.c.b16 %v191, %v190
    %v195 = vpack.c.b16 %v193, %v192
    %vm196 = vcmask 130048
    %v198 = vsel %vm196, %v194, 0
    %v201 = vsel %vm196, %v195, 0
    %203 = vmatprep.subr.bf16.mxu0 0
    %204 = vmatpush1.bf16.msra.mxu0 %v181
    %205 = vmatprep.subr.bf16.mxu0 0
    %206 = vmatpush1.bf16.msra.mxu0 0
    %207 = vmatprep.subr.bf16.mxu0 0
    %208 = vmatpush1.bf16.msra.mxu0 0
    %209 = vmatprep.subr.bf16.mxu0 0
    %210 = vmatpush1.bf16.msra.mxu0 0
    %211 = vmatprep.subr.bf16.mxu0 0
    %212 = vmatpush1.bf16.msra.mxu0 0
    %213 = vmatprep.subr.bf16.mxu0 0
    %214 = vmatpush1.bf16.msra.mxu0 0
    %215 = vmatprep.subr.bf16.mxu0 0
    %216 = vmatpush1.bf16.msra.mxu0 0
    %217 = vmatprep.subr.bf16.mxu0 0
    %218 = vmatpush1.bf16.msra.mxu0 0
    %219 = vmatprep.subr.bf16.mxu0 0
    %220 = vmatpush1.bf16.msra.mxu0 0
    %221 = vmatprep.subr.bf16.mxu0 0
    %222 = vmatpush1.bf16.msra.mxu0 0
    %223 = vmatprep.subr.bf16.mxu0 0
    %224 = vmatpush1.bf16.msra.mxu0 0
    %225 = vmatprep.subr.bf16.mxu0 0
    %226 = vmatpush1.bf16.msra.mxu0 0
    %227 = vmatprep.subr.bf16.mxu0 0
    %228 = vmatpush1.bf16.msra.mxu0 0
    %229 = vmatprep.subr.bf16.mxu0 0
    %230 = vmatpush1.bf16.msra.mxu0 0
    %231 = vmatprep.subr.bf16.mxu0 0
    %232 = vmatpush1.bf16.msra.mxu0 0
    %233 = vmatprep.subr.bf16.mxu0 0
    %234 = vmatpush1.bf16.msra.mxu0 0
    %235 = vmatprep.mubr.bf16.mxu0 0
    %236 = vmatmul.mubr.bf16.gmra.mrb[0].mxu0 %v198
    %v237 = vpop.f32.mrb[0].mxu0
    %v238 = vadd.f32 %v182, %v237
    %v239 = vpop.f32.mrb[0].mxu0
    %v240 = vpop.f32.mrb[0].mxu0
    %v241 = vadd.f32 %v183, %v240
    %v242 = vpop.f32.mrb[0].mxu0
    %243 = vmatprep.mubr.bf16.mxu0 0
    %244 = vmatmul.mubr.bf16.gmra.mrb[0].mxu0 %v201
    %v245 = vpop.f32.mrb[0].mxu0
    %v246 = vadd.f32 %v184, %v245
    %v247 = vpop.f32.mrb[0].mxu0
    %v248 = vpop.f32.mrb[0].mxu0
    %v249 = vadd.f32 %v185, %v248
    %v250 = vpop.f32.mrb[0].mxu0
    %251 = vdwg.mxu0
    %v252 = vmax.f32 %v238, 0.0
    %v253 = vmax.f32 %v241, 0.0
    %v254 = vmax.f32 %v246, 0.0
    %v255 = vmax.f32 %v249, 0.0
    %v256 = vld [vmem:[#allocation7] sm:$0xf]
    %v257 = vpack.c.bf16 %v253, %v252
    %v258 = vpack.c.bf16 %v255, %v254
    %vm259 = vcmask 261120
    %v261 = vsel %vm259, %v256, 0
    %263 = vmatprep.subr.bf16.mxu0 0
    %264 = vmatpush1.bf16.msra.mxu0 %v257
    %265 = vmatprep.subr.bf16.mxu0 0
    %266 = vmatpush1.bf16.msra.mxu0 %v258
    %267 = vmatprep.subr.bf16.mxu0 0
    %268 = vmatpush1.bf16.msra.mxu0 0
    %269 = vmatprep.subr.bf16.mxu0 0
    %270 = vmatpush1.bf16.msra.mxu0 0
    %271 = vmatprep.subr.bf16.mxu0 0
    %272 = vmatpush1.bf16.msra.mxu0 0
    %273 = vmatprep.subr.bf16.mxu0 0
    %274 = vmatpush1.bf16.msra.mxu0 0
    %275 = vmatprep.subr.bf16.mxu0 0
    %276 = vmatpush1.bf16.msra.mxu0 0
    %277 = vmatprep.subr.bf16.mxu0 0
    %278 = vmatpush1.bf16.msra.mxu0 0
    %279 = vmatprep.subr.bf16.mxu0 0
    %280 = vmatpush1.bf16.msra.mxu0 0
    %281 = vmatprep.subr.bf16.mxu0 0
    %282 = vmatpush1.bf16.msra.mxu0 0
    %283 = vmatprep.subr.bf16.mxu0 0
    %284 = vmatpush1.bf16.msra.mxu0 0
    %285 = vmatprep.subr.bf16.mxu0 0
    %286 = vmatpush1.bf16.msra.mxu0 0
    %287 = vmatprep.subr.bf16.mxu0 0
    %288 = vmatpush1.bf16.msra.mxu0 0
    %289 = vmatprep.subr.bf16.mxu0 0
    %290 = vmatpush1.bf16.msra.mxu0 0
    %291 = vmatprep.subr.bf16.mxu0 0
    %292 = vmatpush1.bf16.msra.mxu0 0
    %293 = vmatprep.subr.bf16.mxu0 0
    %294 = vmatpush1.bf16.msra.mxu0 0
    %295 = vmatprep.mubr.bf16.mxu0 0
    %296 = vmatmul.mubr.bf16.gmra.mrb[0].mxu0 %v261
    %v297 = vpop.f32.mrb[0].mxu0
    %v298 = vadd.f32 0.0, %v297
    %v299 = vpop.f32.mrb[0].mxu0
    %v300 = vpop.f32.mrb[0].mxu0
    %v301 = vpop.f32.mrb[0].mxu0
    %302 = vdwg.mxu0
    %v303 = vpack.c.bf16 %v298, %v298
    %v304 = vld [vmem:[%s5] sm:$0xff]
    %305 = vmatprep.subr.bf16.mxu0 0
    %306 = vmatpush1.bf16.msra.mxu0 %v120
    %307 = vmatprep.subr.bf16.mxu0 0
    %308 = vmatpush1.bf16.msra.mxu0 %v121
    %309 = vmatprep.subr.bf16.mxu0 0
    %310 = vmatpush1.bf16.msra.mxu0 %v122
    %311 = vmatprep.subr.bf16.mxu0 0
    %312 = vmatpush1.bf16.msra.mxu0 %v123
    %313 = vmatprep.subr.bf16.mxu0 0
    %314 = vmatpush1.bf16.msra.mxu0 %v124
    %315 = vmatprep.subr.bf16.mxu0 0
    %316 = vmatpush1.bf16.msra.mxu0 %v125
    %317 = vmatprep.subr.bf16.mxu0 0
    %318 = vmatpush1.bf16.msra.mxu0 %v126
    %319 = vmatprep.subr.bf16.mxu0 0
    %320 = vmatpush1.bf16.msra.mxu0 %v127
    %321 = vmatprep.subr.bf16.mxu0 0
    %322 = vmatpush1.bf16.msra.mxu0 0
    %323 = vmatprep.subr.bf16.mxu0 0
    %324 = vmatpush1.bf16.msra.mxu0 0
    %325 = vmatprep.subr.bf16.mxu0 0
    %326 = vmatpush1.bf16.msra.mxu0 0
    %327 = vmatprep.subr.bf16.mxu0 0
    %328 = vmatpush1.bf16.msra.mxu0 0
    %329 = vmatprep.subr.bf16.mxu0 0
    %330 = vmatpush1.bf16.msra.mxu0 0
    %331 = vmatprep.subr.bf16.mxu0 0
    %332 = vmatpush1.bf16.msra.mxu0 0
    %333 = vmatprep.subr.bf16.mxu0 0
    %334 = vmatpush1.bf16.msra.mxu0 0
    %335 = vmatprep.subr.bf16.mxu0 0
    %336 = vmatpush1.bf16.msra.mxu0 0
    %337 = vmatprep.mubr.bf16.mxu0 0
    %338 = vmatmul.mubr.bf16.gmra.mrb[0].mxu0 %v303
    %v339 = vpop.f32.mrb[0].mxu0
    %v340 = vadd.f32 %v304, %v339
    %v341 = vpop.f32.mrb[0].mxu0
    %v342 = vpop.f32.mrb[0].mxu0
    %v343 = vpop.f32.mrb[0].mxu0
    %344 = vdwg.mxu0
    %v345 = vmax.f32 %v340, 0.0
    %346 = vst [vmem:[#allocation8] sm:$0xff] %v345
    // Predicated region
    $region38: #{tpu_custom_call.1} parent=1 // pred_check
      _
    $region39: #{tpu_custom_call.1} parent=1 // pred_check_branch
      %348 = sbr.rel (0) target = $region41
    $region40: #{tpu_custom_call.1} parent=1 // pred_region
      %s350 = ssub.s32 128, 128
      %351 = vsyncadd [#allocation4], %s350
      %s353 = sshll.u32 [#allocation8], 4
      %s354 = int_to_ptr.vmem [resolvable:$true] %s353
      %356 = dma.vmem_to_hbm [thread:$0]  %s354, 128, %s6, [#allocation4]
    $region41: #{tpu_custom_call.1} parent=1 // pred_fallthru
      _
    // Predicated region
    $region42: #{tpu_custom_call.1} parent=1 // pred_check
      _
    $region43: #{tpu_custom_call.1} parent=1 // pred_check_branch
      %358 = sbr.rel (0) target = $region45
    $region44: #{tpu_custom_call.1} parent=1 // pred_region
      %359 = dma.done [#allocation4], 128
    $region45: #{tpu_custom_call.1} parent=1 // pred_fallthru
      _
    %360 = vsyncpa [#allocation3], 1
    %361 = vsyncpa [#allocation6], 1
    %362 = vsyncpa [#allocation4], 1

</llo_original>
